<compile_context>
chip_gen: v7x
topology: tpu7x:2x2x1
jax: 0.10.0
libtpu: 0.0.40
codegen_flags: <defaults>
</compile_context>

<pallas_src>
import functools

import jax
import jax.numpy as jnp
from jax import lax
from jax.experimental import pallas as pl
from jax.experimental.pallas import tpu as pltpu


LANE = 128  # every folded weight / activation is padded to one 128-lane vreg column


# ----------------------------------------------------------------------------
# Pallas kernel: full Qnet1 forward for one batch tile
#   10 small 128-wide MXU dots + ReLU + 4-way softmax + ONE dense (TB,128) store
# ----------------------------------------------------------------------------
def qnet1_kernel(x_ref, p_ref, out_ref, *, L, n_heads):
    """L: name -> (row_offset, n_rows, n_cols) into the packed parameter buffer."""

    def ld(name):
        off, r, c = L[name]
        return p_ref[pl.ds(off, r), pl.ds(0, c)]            # static slice, no DMA

    def mm(a, b):                                           # bf16 x bf16 -> f32 MXU
        return jnp.dot(a.astype(b.dtype), b, preferred_element_type=jnp.float32)

    relu = lambda v: jnp.maximum(v, 0.0)

    X = x_ref[...]                                          # (TB, 128) activations

    # conv_module1: conv1 + ReLU + conv1_1 + ReLU, folded to two matmuls
    # (zero padding, stride, and the Lc1..Lc4 broadcast add folded into W1/b1).
    h1 = relu(mm(X, ld("W1")) + ld("b1"))                   # (TB, 128): 100 real lanes
    h2 = relu(mm(h1, ld("W2")) + ld("b2"))                  # (TB, 128): node real lanes

    # conv_module2 (output length 1) == two plain linears.
    h3 = relu(mm(X, ld("W3")) + ld("b3"))                   # (TB, 128): 80 real lanes
    s40 = relu(mm(h3, ld("W4")) + ld("b4"))                 # (TB, 128): 40 real lanes

    # s_layer: Linear(40, 4) + softmax(dim=1); reciprocal on the idle EUP slot.
    logits = mm(s40, ld("Ws")) + ld("bs")                   # (TB, 4)
    m = jnp.max(logits, axis=1, keepdims=True)
    e = jnp.exp(logits - m)
    sbs = e * pl.reciprocal(jnp.sum(e, axis=1, keepdims=True), approx=True)

    # Four SHARED fc / fc_out heads:  fc(out + s) = fc(out) + s * rowsum(Wfc),
    # so the expensive fc matmul is done once and re-biased per head on the VPU.
    base = mm(h2, ld("Wfc")) + ld("bfc")                    # (TB, 128)
    rs = ld("rs").astype(jnp.float32)                       # (1, 128) rowsum(Wfc)
    out = ld("bout").astype(jnp.float32)                    # (1, 128), broadcasts below
    for k in range(n_heads):
        hk = relu(base + sbs[:, k:k + 1] * rs)              # head-k hidden (TB, 128)
        out = out + mm(hk, ld(f"Wout{k}"))                  # lands in lanes [k*os,(k+1)*os)
    out_ref[...] = out.astype(out_ref.dtype)                # single lane-dense store


# ----------------------------------------------------------------------------
# One-time parameter folding + packing (hoisted out of the per-call path).
# ----------------------------------------------------------------------------
def _pack_rows(entries, dtype, width=LANE, align=16):
    """Stack named 2-D mats into one (R, width) buffer; 16-row-aligned offsets."""
    chunks, layout, row = [], {}, 0
    for name, m in entries:
        r, c = m.shape
        layout[name] = (row, r, c)
        chunks.append(jnp.pad(m, ((0, 0), (0, width - c))).astype(dtype))
        row += r
        pad = (-row) % align
        if pad:
            chunks.append(jnp.zeros((pad, width), dtype))
            row += pad
    return jnp.concatenate(chunks, axis=0), layout


def fold_qnet1_params(P, *, Num_packet, Num_file, F_packet, node, output_size,
                      param_dtype=jnp.bfloat16):
    """Fold every conv/linear into 128-lane-padded matmul weights, pack into one buffer."""
    f32 = jnp.float32
    Fp, kp, kf = F_packet, Num_packet, Num_file
    L1 = (Fp + 2 - kp) // kp + 1
    L2 = (L1 + 2 - kf) // 1 + 1
    assert 40 * L2 == node, "node must equal 40 * conv_module1 output length"
    assert Fp >= 4, "F_packet must be >= 4 (prop = x[:, 5, :4])"

    K0 = 5 * Fp + 5                 # real packed-input features
    N1 = 20 * L1                    # conv1 real output lanes (pad windows dropped)
    NO = 4 * output_size            # real output lanes
    assert max(K0, N1, node, NO, 80) <= LANE, \
        "single-tile folded kernel assumes each layer fits in 128 lanes"

    lcw5 = jnp.concatenate([P["lc_w"].astype(f32), jnp.zeros((1,), f32)])
    lcb5 = jnp.concatenate([P["lc_b"].astype(f32), jnp.zeros((1,), f32)])
    W1, b1 = P["w1"].astype(f32), P["b1"].astype(f32)       # (20,5,kp), (20,)
    W2, b2 = P["w2"].astype(f32), P["b2"].astype(f32)       # (40,20,kf), (40,)
    W3, b3 = P["w3"].astype(f32), P["b3"].astype(f32)       # (80,Fp,5), (80,)
    W4, b4 = P["w4"].astype(f32), P["b4"].astype(f32)       # (40,80,1), (40,)
    Ws, bs = P["ws"].astype(f32), P["bs"].astype(f32)       # (4,40), (4,)
    Wfc, bfc = P["wfc"].astype(f32), P["bfc"].astype(f32)   # (node,node), (node,)
    Wout, bout = P["wout"].astype(f32), P["bout"].astype(f32)  # (os,node), (os,)

    # conv1 (5->20, k=kp, stride=kp, pad=1) + Lc broadcast add -> (128,128) weight.
    W1cat = jnp.zeros((LANE, LANE), f32)
    b1cat = jnp.zeros((LANE,), f32)
    for i in range(L1):
        col = i * 20
        wvalid = jnp.zeros((20, 5), f32)
        for t in range(kp):
            idx = i * kp + t - 1                            # padding = 1
            if 0 <= idx < Fp:
                W1cat = W1cat.at[idx * 5:(idx + 1) * 5, col:col + 20].set(W1[:, :, t].T)
                wvalid = wvalid + W1[:, :, t]
        # Lc add only contributes through non-padded taps of this window.
        W1cat = W1cat.at[5 * Fp:5 * Fp + 5, col:col + 20].set(lcw5[:, None] * wvalid.T)
        b1cat = b1cat.at[col:col + 20].set(b1 + wvalid @ lcb5)

    # conv1_1 (20->40, k=kf, stride=1, pad=1) -> banded (128,128) weight.
    W2big = jnp.zeros((LANE, LANE), f32)
    for j in range(L2):
        for t in range(kf):
            i = j + t - 1                                   # real h1 position (pad dropped)
            if 0 <= i < L1:
                W2big = W2big.at[i * 20:(i + 1) * 20, j * 40:(j + 1) * 40].set(W2[:, :, t].T)
    b2big = jnp.zeros((LANE,), f32).at[:node].set(jnp.tile(b2, L2))

    # conv2 (output length 1) + Lc add -> (128,128) weight.
    W3sum = W3.sum(axis=1)                                  # (80, 5)
    W3cat = jnp.zeros((LANE, LANE), f32)
    W3cat = W3cat.at[:5 * Fp, :80].set(W3.reshape(80, 5 * Fp).T)
    W3cat = W3cat.at[5 * Fp:5 * Fp + 5, :80].set(lcw5[:, None] * W3sum.T)
    b3cat = jnp.zeros((LANE,), f32).at[:80].set(b3 + W3sum @ lcb5)

    # conv2_1 (k=1) == Linear(80, 40).
    W4pad = jnp.zeros((LANE, LANE), f32).at[:80, :40].set(W4[:, :, 0].T)
    b4pad = jnp.zeros((LANE,), f32).at[:40].set(b4)

    # SBS linear (40 -> 4); kept 4 lanes wide so the softmax sums only real lanes.
    Wspad = jnp.zeros((LANE, 4), f32).at[:40, :].set(Ws.T)
    bsrow = bs.reshape(1, 4)

    # Shared fc head; permute input index from torch's (c*L2 + j) flatten to our (j*40 + c).
    wfc_perm = jnp.transpose(Wfc.reshape(node, 40, L2), (2, 1, 0)).reshape(node, node)
    Wfcpad = jnp.zeros((LANE, LANE), f32).at[:node, :node].set(wfc_perm)
    bfcrow = jnp.zeros((LANE,), f32).at[:node].set(bfc)
    rsrow = jnp.zeros((LANE,), f32).at[:node].set(Wfc.sum(axis=1))   # fc(x+s)=fc(x)+s*rowsum

    # Shared fc_out; head k's outputs land in lanes [k*os, (k+1)*os) of the 128-lane output.
    woutk = []
    for k in range(4):
        wk = jnp.zeros((LANE, LANE), f32)
        wk = wk.at[:node, k * output_size:(k + 1) * output_size].set(Wout.T)
        woutk.append(wk)
    boutrow = jnp.zeros((LANE,), f32).at[:NO].set(jnp.tile(bout, 4))

    entries = [("W1", W1cat), ("b1", b1cat[None]),
               ("W2", W2big), ("b2", b2big[None]),
               ("W3", W3cat), ("b3", b3cat[None]),
               ("W4", W4pad), ("b4", b4pad[None]),
               ("Ws", Wspad), ("bs", bsrow),
               ("Wfc", Wfcpad), ("bfc", bfcrow[None]), ("rs", rsrow[None]),
               ("Wout0", woutk[0]), ("Wout1", woutk[1]),
               ("Wout2", woutk[2]), ("Wout3", woutk[3]),
               ("bout", boutrow[None])]
    pbuf, layout = _pack_rows(entries, param_dtype)
    return pbuf, layout


# ----------------------------------------------------------------------------
# Per-call forward: activation layout + one pallas_call.
# ----------------------------------------------------------------------------
def _pick_tb(B, batch_tile):
    if B > batch_tile:                       # fill the MXU rows (256 on v6e/v7x)
        return batch_tile
    # v7x has 2 TensorCores: give the "parallel" batch grid 2 steps when an
    # 8-row-aligned split is possible (harmless on v5e/v6e).
    if B >= 16 and B % 2 == 0 and (B // 2) % 8 == 0:
        return B // 2
    return B


def qnet1_forward(x, packed_buf, *, layout, F_packet, NO, batch_tile=256):
    """x: (B, 6, F_packet). Returns (B, NO) float32."""
    B = x.shape[0]
    Fp = F_packet
    f32 = jnp.float32

    # Activation layout: x_flat[b, f*5 + c] = x[b, c, f], then the 4 prop features,
    # then zeros up to 128 lanes (dummy 5th Lc channel + padding).
    xf = x.astype(f32)
    x_flat = jnp.transpose(xf[:, :5, :], (0, 2, 1)).reshape(B, 5 * Fp)
    pad = LANE - (5 * Fp + 4)
    Xcat = jnp.concatenate([x_flat, xf[:, 5, :4], jnp.zeros((B, pad), f32)], axis=1)
    Xcat = Xcat.astype(packed_buf.dtype)

    TB = _pick_tb(B, batch_tile)
    grid = (pl.cdiv(B, TB),)
    kernel = functools.partial(qnet1_kernel, L=layout, n_heads=4)

    # NOTE: when B % TB != 0 the last grid step computes on padded garbage rows;
    # results are discarded on writeback (benign).
    out_pad = pl.pallas_call(
        kernel,
        out_shape=jax.ShapeDtypeStruct((B, LANE), f32),
        grid=grid,
        in_specs=[pl.BlockSpec((TB, LANE), lambda i: (i, 0)),
                  pl.BlockSpec(packed_buf.shape, lambda i: (0, 0))],   # VMEM-resident
        out_specs=pl.BlockSpec((TB, LANE), lambda i: (i, 0)),
        compiler_params=pltpu.CompilerParams(dimension_semantics=("parallel",)),
    )(Xcat, packed_buf)
    return out_pad[:, :NO]                   # drop the lane padding outside the kernel


# ----------------------------------------------------------------------------
# Pure-JAX reference (mirrors the PyTorch forward exactly, f32)
# ----------------------------------------------------------------------------
def qnet1_reference(x, P, *, Num_packet, Num_file, F_packet, node, output_size):
    relu = lambda v: jnp.maximum(v, 0.0)
    B = x.shape[0]
    prop = x[:, 5, :4]
    add = jnp.stack([P["lc_w"][c] * prop[:, c] + P["lc_b"][c] for c in range(4)]
                    + [jnp.zeros((B,), jnp.float32)], axis=1)            # (B, 5)
    x_s = x[:, :5, :] + add[:, :, None]
    dn = ("NCH", "OIH", "NCH")
    h1 = relu(lax.conv_general_dilated(x_s, P["w1"], (Num_packet,), [(1, 1)],
                                       dimension_numbers=dn) + P["b1"][None, :, None])
    h2 = relu(lax.conv_general_dilated(h1, P["w2"], (1,), [(1, 1)],
                                       dimension_numbers=dn) + P["b2"][None, :, None])
    out = h2.reshape(B, node)
    xt = jnp.transpose(x_s, (0, 2, 1))
    h3 = relu(lax.conv_general_dilated(xt, P["w3"], (5,), [(0, 0)],
                                       dimension_numbers=dn) + P["b3"][None, :, None])
    h4 = relu(lax.conv_general_dilated(h3, P["w4"], (1,), [(0, 0)],
                                       dimension_numbers=dn) + P["b4"][None, :, None])
    s_out = h4.reshape(B, 40)
    sbs = jax.nn.softmax(s_out @ P["ws"].T + P["bs"], axis=1)
    outs = []
    for k in range(4):                                                   # fc/fc_out shared
        hk = relu((out + sbs[:, k:k + 1]) @ P["wfc"].T + P["bfc"])
        outs.append(hk @ P["wout"].T + P["bout"])
    return jnp.concatenate(outs, axis=1)


# ----------------------------------------------------------------------------
if __name__ == "__main__":
    # Small, consistent hyper-parameters implied by the module.
    Num_packet, Num_file, F_packet = 4, 5, 20      # F_packet = Num_file * Num_packet
    L1 = (F_packet + 2 - Num_packet) // Num_packet + 1        # 5
    L2 = (L1 + 2 - Num_file) // 1 + 1                          # 3
    node = 40 * L2                                              # 120
    output_size = 8
    B = 2

    key = jax.random.PRNGKey(0)
    ks = jax.random.split(key, 20)
    f32 = jnp.float32
    sc = 0.1
    P = {
        "lc_w":  sc * jax.random.normal(ks[0], (4,), f32),
        "lc_b":  sc * jax.random.normal(ks[1], (4,), f32),
        "w1":    sc * jax.random.normal(ks[2], (20, 5, Num_packet), f32),
        "b1":    sc * jax.random.normal(ks[3], (20,), f32),
        "w2":    sc * jax.random.normal(ks[4], (40, 20, Num_file), f32),
        "b2":    sc * jax.random.normal(ks[5], (40,), f32),
        "w3":    sc * jax.random.normal(ks[6], (80, F_packet, 5), f32),
        "b3":    sc * jax.random.normal(ks[7], (80,), f32),
        "w4":    sc * jax.random.normal(ks[8], (40, 80, 1), f32),
        "b4":    sc * jax.random.normal(ks[9], (40,), f32),
        "ws":    sc * jax.random.normal(ks[10], (4, 40), f32),
        "bs":    sc * jax.random.normal(ks[11], (4,), f32),
        "wfc":   sc * jax.random.normal(ks[12], (node, node), f32),
        "bfc":   sc * jax.random.normal(ks[13], (node,), f32),
        "wout":  sc * jax.random.normal(ks[14], (output_size, node), f32),
        "bout":  sc * jax.random.normal(ks[15], (output_size,), f32),
    }
    x = jax.random.normal(ks[16], (B, 6, F_packet), f32)

    hp = dict(Num_packet=Num_packet, Num_file=Num_file, F_packet=F_packet,
              node=node, output_size=output_size)

    # Fold + pack ONCE (hoisted out of the per-call path, per the perf review).
    pbuf, layout = fold_qnet1_params(P, **hp, param_dtype=jnp.bfloat16)

    fwd = jax.jit(functools.partial(qnet1_forward, layout=layout,
                                    F_packet=F_packet, NO=4 * output_size))
    out = jax.block_until_ready(fwd(x, pbuf))

    ref = qnet1_reference(x, P, **hp)
    assert out.shape == (B, 4 * output_size)
    # Tolerance covers bf16 operand rounding (f32 accumulation) plus the approx
    # EUP reciprocal in the softmax; f32 params reproduce the reference to ~1e-5.
    err = jnp.max(jnp.abs(out - ref))
    assert jnp.allclose(out, ref, rtol=5e-2, atol=2e-2), f"max abs err {err}"

    print("KERNEL_OK")
</pallas_src>

<mosaic_0001>
module attributes {stable_mosaic.version = 11 : i64} {
  func.func @qnet1_kernel(%arg0: i32, %arg1: memref<2x128xbf16, #tpu.memory_space<vmem>>, %arg2: memref<1408x128xbf16, #tpu.memory_space<vmem>>, %arg3: memref<2x128xf32, #tpu.memory_space<vmem>>) attributes {dimension_semantics = [#tpu.dimension_semantics<parallel>], iteration_bounds = array<i64: 1>, scalar_prefetch = 0 : i64, scratch_operands = 0 : i64, tpu.core_type = #tpu.core_type<tc>, window_params = [{transform_indices = @transform_0, window_bounds = array<i64: 2, 128>}, {pipeline_mode = #tpu.pipeline_mode<synchronous>, transform_indices = @transform_1, window_bounds = array<i64: 1408, 128>}, {transform_indices = @transform_2, window_bounds = array<i64: 2, 128>}]} {
    %c0 = arith.constant 0 : index
    %c0_0 = arith.constant 0 : index
    %0 = vector.load %arg1[%c0, %c0_0] : memref<2x128xbf16, #tpu.memory_space<vmem>>, vector<2x128xbf16>
    %c0_1 = arith.constant 0 : index
    %c0_2 = arith.constant 0 : index
    %1 = vector.load %arg2[%c0_1, %c0_2] : memref<1408x128xbf16, #tpu.memory_space<vmem>>, vector<128x128xbf16>
    %cst = arith.constant dense<0.000000e+00> : vector<2x128xf32>
    %2 = tpu.matmul %0, %1, %cst {dimension_numbers = #tpu.dot_dimension_numbers<[1], [0], [0], [1], [0, 0, 1, 1], [], []>} : vector<2x128xbf16>, vector<128x128xbf16>, vector<2x128xf32> -> vector<2x128xf32>
    %c128 = arith.constant 128 : index
    %c0_3 = arith.constant 0 : index
    %3 = vector.load %arg2[%c128, %c0_3] : memref<1408x128xbf16, #tpu.memory_space<vmem>>, vector<1x128xbf16>
    %4 = arith.extf %3 : vector<1x128xbf16> to vector<1x128xf32>
    %5 = vector.broadcast %4 : vector<1x128xf32> to vector<2x128xf32>
    %6 = arith.addf %2, %5 : vector<2x128xf32>
    %cst_4 = arith.constant 0.000000e+00 : f32
    %7 = vector.broadcast %cst_4 : f32 to vector<2x128xf32>
    %8 = arith.maximumf %6, %7 : vector<2x128xf32>
    %c144 = arith.constant 144 : index
    %c0_5 = arith.constant 0 : index
    %9 = vector.load %arg2[%c144, %c0_5] : memref<1408x128xbf16, #tpu.memory_space<vmem>>, vector<128x128xbf16>
    %10 = arith.truncf %8 : vector<2x128xf32> to vector<2x128xbf16>
    %cst_6 = arith.constant dense<0.000000e+00> : vector<2x128xf32>
    %11 = tpu.matmul %10, %9, %cst_6 {dimension_numbers = #tpu.dot_dimension_numbers<[1], [0], [0], [1], [0, 0, 1, 1], [], []>} : vector<2x128xbf16>, vector<128x128xbf16>, vector<2x128xf32> -> vector<2x128xf32>
    %c272 = arith.constant 272 : index
    %c0_7 = arith.constant 0 : index
    %12 = vector.load %arg2[%c272, %c0_7] : memref<1408x128xbf16, #tpu.memory_space<vmem>>, vector<1x128xbf16>
    %13 = arith.extf %12 : vector<1x128xbf16> to vector<1x128xf32>
    %14 = vector.broadcast %13 : vector<1x128xf32> to vector<2x128xf32>
    %15 = arith.addf %11, %14 : vector<2x128xf32>
    %cst_8 = arith.constant 0.000000e+00 : f32
    %16 = vector.broadcast %cst_8 : f32 to vector<2x128xf32>
    %17 = arith.maximumf %15, %16 : vector<2x128xf32>
    %c288 = arith.constant 288 : index
    %c0_9 = arith.constant 0 : index
    %18 = vector.load %arg2[%c288, %c0_9] : memref<1408x128xbf16, #tpu.memory_space<vmem>>, vector<128x128xbf16>
    %cst_10 = arith.constant dense<0.000000e+00> : vector<2x128xf32>
    %19 = tpu.matmul %0, %18, %cst_10 {dimension_numbers = #tpu.dot_dimension_numbers<[1], [0], [0], [1], [0, 0, 1, 1], [], []>} : vector<2x128xbf16>, vector<128x128xbf16>, vector<2x128xf32> -> vector<2x128xf32>
    %c416 = arith.constant 416 : index
    %c0_11 = arith.constant 0 : index
    %20 = vector.load %arg2[%c416, %c0_11] : memref<1408x128xbf16, #tpu.memory_space<vmem>>, vector<1x128xbf16>
    %21 = arith.extf %20 : vector<1x128xbf16> to vector<1x128xf32>
    %22 = vector.broadcast %21 : vector<1x128xf32> to vector<2x128xf32>
    %23 = arith.addf %19, %22 : vector<2x128xf32>
    %cst_12 = arith.constant 0.000000e+00 : f32
    %24 = vector.broadcast %cst_12 : f32 to vector<2x128xf32>
    %25 = arith.maximumf %23, %24 : vector<2x128xf32>
    %c432 = arith.constant 432 : index
    %c0_13 = arith.constant 0 : index
    %26 = vector.load %arg2[%c432, %c0_13] : memref<1408x128xbf16, #tpu.memory_space<vmem>>, vector<128x128xbf16>
    %27 = arith.truncf %25 : vector<2x128xf32> to vector<2x128xbf16>
    %cst_14 = arith.constant dense<0.000000e+00> : vector<2x128xf32>
    %28 = tpu.matmul %27, %26, %cst_14 {dimension_numbers = #tpu.dot_dimension_numbers<[1], [0], [0], [1], [0, 0, 1, 1], [], []>} : vector<2x128xbf16>, vector<128x128xbf16>, vector<2x128xf32> -> vector<2x128xf32>
    %c560 = arith.constant 560 : index
    %c0_15 = arith.constant 0 : index
    %29 = vector.load %arg2[%c560, %c0_15] : memref<1408x128xbf16, #tpu.memory_space<vmem>>, vector<1x128xbf16>
    %30 = arith.extf %29 : vector<1x128xbf16> to vector<1x128xf32>
    %31 = vector.broadcast %30 : vector<1x128xf32> to vector<2x128xf32>
    %32 = arith.addf %28, %31 : vector<2x128xf32>
    %cst_16 = arith.constant 0.000000e+00 : f32
    %33 = vector.broadcast %cst_16 : f32 to vector<2x128xf32>
    %34 = arith.maximumf %32, %33 : vector<2x128xf32>
    %c576 = arith.constant 576 : index
    %c0_17 = arith.constant 0 : index
    %35 = vector.load %arg2[%c576, %c0_17] : memref<1408x128xbf16, #tpu.memory_space<vmem>>, vector<128x4xbf16>
    %36 = arith.truncf %34 : vector<2x128xf32> to vector<2x128xbf16>
    %cst_18 = arith.constant dense<0.000000e+00> : vector<2x4xf32>
    %37 = tpu.matmul %36, %35, %cst_18 {dimension_numbers = #tpu.dot_dimension_numbers<[1], [0], [0], [1], [0, 0, 1, 1], [], []>} : vector<2x128xbf16>, vector<128x4xbf16>, vector<2x4xf32> -> vector<2x4xf32>
    %c704 = arith.constant 704 : index
    %c0_19 = arith.constant 0 : index
    %38 = vector.load %arg2[%c704, %c0_19] : memref<1408x128xbf16, #tpu.memory_space<vmem>>, vector<1x4xbf16>
    %39 = arith.extf %38 : vector<1x4xbf16> to vector<1x4xf32>
    %40 = vector.broadcast %39 : vector<1x4xf32> to vector<2x4xf32>
    %41 = arith.addf %37, %40 : vector<2x4xf32>
    %cst_20 = arith.constant dense<0xFF800000> : vector<2xf32>
    %42 = vector.multi_reduction <maximumf>, %41, %cst_20 [1] : vector<2x4xf32> to vector<2xf32>
    %43 = vector.shape_cast %42 : vector<2xf32> to vector<2x1xf32>
    %44 = vector.broadcast %43 : vector<2x1xf32> to vector<2x4xf32>
    %45 = arith.subf %41, %44 : vector<2x4xf32>
    %46 = math.exp %45 : vector<2x4xf32>
    %cst_21 = arith.constant dense<0.000000e+00> : vector<2xf32>
    %47 = vector.multi_reduction <add>, %46, %cst_21 [1] : vector<2x4xf32> to vector<2xf32>
    %48 = vector.shape_cast %47 : vector<2xf32> to vector<2x1xf32>
    %49 = tpu.reciprocal %48 {approx = true} : vector<2x1xf32> -> vector<2x1xf32>
    %50 = vector.broadcast %49 : vector<2x1xf32> to vector<2x4xf32>
    %51 = arith.mulf %46, %50 : vector<2x4xf32>
    %c720 = arith.constant 720 : index
    %c0_22 = arith.constant 0 : index
    %52 = vector.load %arg2[%c720, %c0_22] : memref<1408x128xbf16, #tpu.memory_space<vmem>>, vector<128x128xbf16>
    %53 = arith.truncf %17 : vector<2x128xf32> to vector<2x128xbf16>
    %cst_23 = arith.constant dense<0.000000e+00> : vector<2x128xf32>
    %54 = tpu.matmul %53, %52, %cst_23 {dimension_numbers = #tpu.dot_dimension_numbers<[1], [0], [0], [1], [0, 0, 1, 1], [], []>} : vector<2x128xbf16>, vector<128x128xbf16>, vector<2x128xf32> -> vector<2x128xf32>
    %c848 = arith.constant 848 : index
    %c0_24 = arith.constant 0 : index
    %55 = vector.load %arg2[%c848, %c0_24] : memref<1408x128xbf16, #tpu.memory_space<vmem>>, vector<1x128xbf16>
    %56 = arith.extf %55 : vector<1x128xbf16> to vector<1x128xf32>
    %57 = vector.broadcast %56 : vector<1x128xf32> to vector<2x128xf32>
    %58 = arith.addf %54, %57 : vector<2x128xf32>
    %c864 = arith.constant 864 : index
    %c0_25 = arith.constant 0 : index
    %59 = vector.load %arg2[%c864, %c0_25] : memref<1408x128xbf16, #tpu.memory_space<vmem>>, vector<1x128xbf16>
    %60 = arith.extf %59 : vector<1x128xbf16> to vector<1x128xf32>
    %c1392 = arith.constant 1392 : index
    %c0_26 = arith.constant 0 : index
    %61 = vector.load %arg2[%c1392, %c0_26] : memref<1408x128xbf16, #tpu.memory_space<vmem>>, vector<1x128xbf16>
    %62 = arith.extf %61 : vector<1x128xbf16> to vector<1x128xf32>
    %63 = vector.extract_strided_slice %51 {offsets = [0, 0], sizes = [2, 1], strides = [1, 1]} : vector<2x4xf32> to vector<2x1xf32>
    %64 = vector.broadcast %63 : vector<2x1xf32> to vector<2x128xf32>
    %65 = vector.broadcast %60 : vector<1x128xf32> to vector<2x128xf32>
    %66 = arith.mulf %64, %65 : vector<2x128xf32>
    %67 = arith.addf %58, %66 : vector<2x128xf32>
    %cst_27 = arith.constant 0.000000e+00 : f32
    %68 = vector.broadcast %cst_27 : f32 to vector<2x128xf32>
    %69 = arith.maximumf %67, %68 : vector<2x128xf32>
    %c880 = arith.constant 880 : index
    %c0_28 = arith.constant 0 : index
    %70 = vector.load %arg2[%c880, %c0_28] : memref<1408x128xbf16, #tpu.memory_space<vmem>>, vector<128x128xbf16>
    %71 = arith.truncf %69 : vector<2x128xf32> to vector<2x128xbf16>
    %cst_29 = arith.constant dense<0.000000e+00> : vector<2x128xf32>
    %72 = tpu.matmul %71, %70, %cst_29 {dimension_numbers = #tpu.dot_dimension_numbers<[1], [0], [0], [1], [0, 0, 1, 1], [], []>} : vector<2x128xbf16>, vector<128x128xbf16>, vector<2x128xf32> -> vector<2x128xf32>
    %73 = vector.broadcast %62 : vector<1x128xf32> to vector<2x128xf32>
    %74 = arith.addf %73, %72 : vector<2x128xf32>
    %75 = vector.extract_strided_slice %51 {offsets = [0, 1], sizes = [2, 1], strides = [1, 1]} : vector<2x4xf32> to vector<2x1xf32>
    %76 = vector.broadcast %75 : vector<2x1xf32> to vector<2x128xf32>
    %77 = vector.broadcast %60 : vector<1x128xf32> to vector<2x128xf32>
    %78 = arith.mulf %76, %77 : vector<2x128xf32>
    %79 = arith.addf %58, %78 : vector<2x128xf32>
    %cst_30 = arith.constant 0.000000e+00 : f32
    %80 = vector.broadcast %cst_30 : f32 to vector<2x128xf32>
    %81 = arith.maximumf %79, %80 : vector<2x128xf32>
    %c1008 = arith.constant 1008 : index
    %c0_31 = arith.constant 0 : index
    %82 = vector.load %arg2[%c1008, %c0_31] : memref<1408x128xbf16, #tpu.memory_space<vmem>>, vector<128x128xbf16>
    %83 = arith.truncf %81 : vector<2x128xf32> to vector<2x128xbf16>
    %cst_32 = arith.constant dense<0.000000e+00> : vector<2x128xf32>
    %84 = tpu.matmul %83, %82, %cst_32 {dimension_numbers = #tpu.dot_dimension_numbers<[1], [0], [0], [1], [0, 0, 1, 1], [], []>} : vector<2x128xbf16>, vector<128x128xbf16>, vector<2x128xf32> -> vector<2x128xf32>
    %85 = arith.addf %74, %84 : vector<2x128xf32>
    %86 = vector.extract_strided_slice %51 {offsets = [0, 2], sizes = [2, 1], strides = [1, 1]} : vector<2x4xf32> to vector<2x1xf32>
    %87 = vector.broadcast %86 : vector<2x1xf32> to vector<2x128xf32>
    %88 = vector.broadcast %60 : vector<1x128xf32> to vector<2x128xf32>
    %89 = arith.mulf %87, %88 : vector<2x128xf32>
    %90 = arith.addf %58, %89 : vector<2x128xf32>
    %cst_33 = arith.constant 0.000000e+00 : f32
    %91 = vector.broadcast %cst_33 : f32 to vector<2x128xf32>
    %92 = arith.maximumf %90, %91 : vector<2x128xf32>
    %c1136 = arith.constant 1136 : index
    %c0_34 = arith.constant 0 : index
    %93 = vector.load %arg2[%c1136, %c0_34] : memref<1408x128xbf16, #tpu.memory_space<vmem>>, vector<128x128xbf16>
    %94 = arith.truncf %92 : vector<2x128xf32> to vector<2x128xbf16>
    %cst_35 = arith.constant dense<0.000000e+00> : vector<2x128xf32>
    %95 = tpu.matmul %94, %93, %cst_35 {dimension_numbers = #tpu.dot_dimension_numbers<[1], [0], [0], [1], [0, 0, 1, 1], [], []>} : vector<2x128xbf16>, vector<128x128xbf16>, vector<2x128xf32> -> vector<2x128xf32>
    %96 = arith.addf %85, %95 : vector<2x128xf32>
    %97 = vector.extract_strided_slice %51 {offsets = [0, 3], sizes = [2, 1], strides = [1, 1]} : vector<2x4xf32> to vector<2x1xf32>
    %98 = vector.broadcast %97 : vector<2x1xf32> to vector<2x128xf32>
    %99 = vector.broadcast %60 : vector<1x128xf32> to vector<2x128xf32>
    %100 = arith.mulf %98, %99 : vector<2x128xf32>
    %101 = arith.addf %58, %100 : vector<2x128xf32>
    %cst_36 = arith.constant 0.000000e+00 : f32
    %102 = vector.broadcast %cst_36 : f32 to vector<2x128xf32>
    %103 = arith.maximumf %101, %102 : vector<2x128xf32>
    %c1264 = arith.constant 1264 : index
    %c0_37 = arith.constant 0 : index
    %104 = vector.load %arg2[%c1264, %c0_37] : memref<1408x128xbf16, #tpu.memory_space<vmem>>, vector<128x128xbf16>
    %105 = arith.truncf %103 : vector<2x128xf32> to vector<2x128xbf16>
    %cst_38 = arith.constant dense<0.000000e+00> : vector<2x128xf32>
    %106 = tpu.matmul %105, %104, %cst_38 {dimension_numbers = #tpu.dot_dimension_numbers<[1], [0], [0], [1], [0, 0, 1, 1], [], []>} : vector<2x128xbf16>, vector<128x128xbf16>, vector<2x128xf32> -> vector<2x128xf32>
    %107 = arith.addf %96, %106 : vector<2x128xf32>
    %c0_39 = arith.constant 0 : index
    %c0_40 = arith.constant 0 : index
    %108 = vector.load %arg3[%c0_39, %c0_40] : memref<2x128xf32, #tpu.memory_space<vmem>>, vector<2x128xf32>
    tpu.vector_store %arg3[%c0_39, %c0_40], %107 {strides = array<i32>} : memref<2x128xf32, #tpu.memory_space<vmem>>, vector<2x128xf32>,
    return
  }
  func.func @transform_0(%arg0: i32) -> (i32, i32) {
    %c0_i32 = arith.constant 0 : i32
    %c0_i32_0 = arith.constant 0 : i32
    return %arg0, %c0_i32 : i32, i32
  }
  func.func @transform_1(%arg0: i32) -> (i32, i32) {
    %c0_i32 = arith.constant 0 : i32
    %c0_i32_0 = arith.constant 0 : i32
    %c0_i32_1 = arith.constant 0 : i32
    return %c0_i32, %c0_i32_0 : i32, i32
  }
  func.func @transform_2(%arg0: i32) -> (i32, i32) {
    %c0_i32 = arith.constant 0 : i32
    %c0_i32_0 = arith.constant 0 : i32
    return %arg0, %c0_i32 : i32, i32
  }
}

</mosaic_0001>

<llo_original>
// kernel: qnet1_forward.1
$region0: #{qnet1_forward.1}
  #allocation0 [shape = 'u32[]', space=smem, size = 0x4, offset = 0x4, fixed_abs, tag = 'smem constant byte address 0x4 - core index']
  #allocation1 [shape = 'u32[144,128]{1,0:T(1,128)}', space=vmem, size = 0x12000, scoped, tag = 'internal scratch']
  %s0 = inlined_call_operand.vmem [shape: bf16[2,128], index: 0, kind: input, shape index: {}]
  %s1 = inlined_call_operand.hbm [shape: bf16[1408,128], index: 1, kind: input, shape index: {}]
  %s2 = inlined_call_operand.hbm [shape: f32[2,128], index: 2, kind: output, shape index: {}]
  %s3 = sld [smem:[#allocation0]]
  $region22: #{qnet1_forward.1} parent=0
    _
  %s5 = ssub.s32 1, %s3
  %s6 = scalar_select 0, %s5, %s3
  $region1: #{qnet1_forward.1} parent=0
    #allocation2 [shape = 'u8[360448]{0}', space=vmem, size = 0x58000, scoped, tag = 'input window, operand 1, single buffered']
    #allocation3 [shape = 's32[1]{0}', space=sflag, size = 0x4, scoped, tag = 'scoped memory for qnet1_forward.1']
    #allocation4 [shape = 's32[1]{0}', space=sflag, size = 0x4, scoped, tag = 'scoped memory for qnet1_forward.1']
    #allocation5 [shape = 'u8[1024]{0}', space=vmem, size = 0x400, scoped, tag = 'output window, operand 0, single buffered']
    %7 = vsyncpa [#allocation3], 0
    %8 = vsyncpa [#allocation4], 0
    // Predicated region
    $region2: #{qnet1_forward.1} parent=1 // pred_check
      _
    $region3: #{qnet1_forward.1} parent=1 // pred_check_branch
      %10 = sbr.rel (0) target = $region5
    $region4: #{qnet1_forward.1} parent=1 // pred_region
      _
    $region5: #{qnet1_forward.1} parent=1 // pred_fallthru
      _
    // Predicated region
    $region6: #{qnet1_forward.1} parent=1 // pred_check
      _
    $region7: #{qnet1_forward.1} parent=1 // pred_check_branch
      %12 = sbr.rel (0) target = $region9
    $region8: #{qnet1_forward.1} parent=1 // pred_region
      %s14 = ssub.s32 11264, 11264
      %15 = vsyncadd [#allocation3], %s14
      %s16 = sshll.u32 [#allocation2], 4
      %s17 = int_to_ptr.vmem [resolvable:$true] %s16
      %22 = dma.hbm_to_vmem [thread:$0]  %s1, 11264, %s17, [#allocation3], 64, 64, 4
    $region9: #{qnet1_forward.1} parent=1 // pred_fallthru
      _
    // Predicated region
    $region10: #{qnet1_forward.1} parent=1 // pred_check
      _
    $region11: #{qnet1_forward.1} parent=1 // pred_check_branch
      %24 = sbr.rel (0) target = $region13
    $region12: #{qnet1_forward.1} parent=1 // pred_region
      %25 = dma.done [#allocation3], 11264
    $region13: #{qnet1_forward.1} parent=1 // pred_fallthru
      _
    %v27 = vld [vmem:[%s0] sm:$0x1]
    %v28 = vld [vmem:[#allocation2] sm:$0xf]
    %v29 = vld [vmem:[#allocation2 + $0x4] sm:$0xf]
    %v30 = vld [vmem:[#allocation2 + $0x8] sm:$0xf]
    %v31 = vld [vmem:[#allocation2 + $0xc] sm:$0xf]
    %v32 = vld [vmem:[#allocation2 + $0x10] sm:$0xf]
    %v33 = vld [vmem:[#allocation2 + $0x14] sm:$0xf]
    %v34 = vld [vmem:[#allocation2 + $0x18] sm:$0xf]
    %v35 = vld [vmem:[#allocation2 + $0x1c] sm:$0xf]
    %v36 = vld [vmem:[#allocation2 + $0x20] sm:$0xf]
    %v37 = vld [vmem:[#allocation2 + $0x24] sm:$0xf]
    %v38 = vld [vmem:[#allocation2 + $0x28] sm:$0xf]
    %v39 = vld [vmem:[#allocation2 + $0x2c] sm:$0xf]
    %v40 = vld [vmem:[#allocation2 + $0x30] sm:$0xf]
    %v41 = vld [vmem:[#allocation2 + $0x34] sm:$0xf]
    %v42 = vld [vmem:[#allocation2 + $0x38] sm:$0xf]
    %v43 = vld [vmem:[#allocation2 + $0x3c] sm:$0xf]
    %v44 = vld [vmem:[#allocation2 + $0x40] sm:$0x1]
    %v45 = vunpack.c.l.bf16 %v44
    %v46 = vlaneseq
    %v47 = vshrl.u32 %v46, 7
    %v48 = vsub.s32 0, %v47
    %v49 = vrot.slane %v45, %v48
    %v66 = vunpack.c.l.b16 %v28
    %v67 = vunpack.c.l.b16 %v29
    %v68 = vunpack.c.l.b16 %v30
    %v69 = vunpack.c.l.b16 %v31
    %v70 = vunpack.c.l.b16 %v32
    %v71 = vunpack.c.l.b16 %v33
    %v72 = vunpack.c.l.b16 %v34
    %v73 = vunpack.c.l.b16 %v35
    %v74 = vunpack.c.l.b16 %v36
    %v75 = vunpack.c.l.b16 %v37
    %v76 = vunpack.c.l.b16 %v38
    %v77 = vunpack.c.l.b16 %v39
    %v78 = vunpack.c.l.b16 %v40
    %v79 = vunpack.c.l.b16 %v41
    %v80 = vunpack.c.l.b16 %v42
    %v81 = vunpack.c.l.b16 %v43
    %v82 = vpack.c.b16 %v67, %v66
    %v83 = vpack.c.b16 %v69, %v68
    %v84 = vpack.c.b16 %v71, %v70
    %v85 = vpack.c.b16 %v73, %v72
    %v86 = vpack.c.b16 %v75, %v74
    %v87 = vpack.c.b16 %v77, %v76
    %v88 = vpack.c.b16 %v79, %v78
    %v89 = vpack.c.b16 %v81, %v80
    %98 = vmatprep.subr.bf16.mxu0 0
    %99 = vmatpush1.bf16.msra.mxu0 %v82
    %100 = vmatprep.subr.bf16.mxu0 0
    %101 = vmatpush1.bf16.msra.mxu0 %v83
    %102 = vmatprep.subr.bf16.mxu0 0
    %103 = vmatpush1.bf16.msra.mxu0 %v84
    %104 = vmatprep.subr.bf16.mxu0 0
    %105 = vmatpush1.bf16.msra.mxu0 %v85
    %106 = vmatprep.subr.bf16.mxu0 0
    %107 = vmatpush1.bf16.msra.mxu0 %v86
    %108 = vmatprep.subr.bf16.mxu0 0
    %109 = vmatpush1.bf16.msra.mxu0 %v87
    %110 = vmatprep.subr.bf16.mxu0 0
    %111 = vmatpush1.bf16.msra.mxu0 %v88
    %112 = vmatprep.subr.bf16.mxu0 0
    %113 = vmatpush1.bf16.msra.mxu0 %v89
    %114 = vmatprep.subr.bf16.mxu0 0
    %115 = vmatpush1.bf16.msra.mxu0 0
    %116 = vmatprep.subr.bf16.mxu0 0
    %117 = vmatpush1.bf16.msra.mxu0 0
    %118 = vmatprep.subr.bf16.mxu0 0
    %119 = vmatpush1.bf16.msra.mxu0 0
    %120 = vmatprep.subr.bf16.mxu0 0
    %121 = vmatpush1.bf16.msra.mxu0 0
    %122 = vmatprep.subr.bf16.mxu0 0
    %123 = vmatpush1.bf16.msra.mxu0 0
    %124 = vmatprep.subr.bf16.mxu0 0
    %125 = vmatpush1.bf16.msra.mxu0 0
    %126 = vmatprep.subr.bf16.mxu0 0
    %127 = vmatpush1.bf16.msra.mxu0 0
    %128 = vmatprep.subr.bf16.mxu0 0
    %129 = vmatpush1.bf16.msra.mxu0 0
    %130 = vmatprep.mubr.bf16.mxu0 0
    %131 = vmatmul.mubr.bf16.gmra.mrb[0].mxu0 %v27
    %v132 = vpop.f32.mrb[0].mxu0
    %v133 = vadd.f32 %v49, %v132
    %v134 = vpop.f32.mrb[0].mxu0
    %v135 = vpop.f32.mrb[0].mxu0
    %v136 = vpop.f32.mrb[0].mxu0
    %137 = vdwg.mxu0
    %v138 = vmax.f32 %v133, 0.0
    %v139 = vld [vmem:[#allocation2 + $0x48] sm:$0xf]
    %v140 = vld [vmem:[#allocation2 + $0x4c] sm:$0xf]
    %v141 = vld [vmem:[#allocation2 + $0x50] sm:$0xf]
    %v142 = vld [vmem:[#allocation2 + $0x54] sm:$0xf]
    %v143 = vld [vmem:[#allocation2 + $0x58] sm:$0xf]
    %v144 = vld [vmem:[#allocation2 + $0x5c] sm:$0xf]
    %v145 = vld [vmem:[#allocation2 + $0x60] sm:$0xf]
    %v146 = vld [vmem:[#allocation2 + $0x64] sm:$0xf]
    %v147 = vld [vmem:[#allocation2 + $0x68] sm:$0xf]
    %v148 = vld [vmem:[#allocation2 + $0x6c] sm:$0xf]
    %v149 = vld [vmem:[#allocation2 + $0x70] sm:$0xf]
    %v150 = vld [vmem:[#allocation2 + $0x74] sm:$0xf]
    %v151 = vld [vmem:[#allocation2 + $0x78] sm:$0xf]
    %v152 = vld [vmem:[#allocation2 + $0x7c] sm:$0xf]
    %v153 = vld [vmem:[#allocation2 + $0x80] sm:$0xf]
    %v154 = vld [vmem:[#allocation2 + $0x84] sm:$0xf]
    %v155 = vpack.c.bf16 %v138, %v138
    %v156 = vld [vmem:[#allocation2 + $0x88] sm:$0x1]
    %v157 = vunpack.c.l.bf16 %v156
    %v158 = vlaneseq
    %v159 = vshrl.u32 %v158, 7
    %v160 = vsub.s32 0, %v159
    %v161 = vrot.slane %v157, %v160
    %v178 = vunpack.c.l.b16 %v139
    %v179 = vunpack.c.l.b16 %v140
    %v180 = vunpack.c.l.b16 %v141
    %v181 = vunpack.c.l.b16 %v142
    %v182 = vunpack.c.l.b16 %v143
    %v183 = vunpack.c.l.b16 %v144
    %v184 = vunpack.c.l.b16 %v145
    %v185 = vunpack.c.l.b16 %v146
    %v186 = vunpack.c.l.b16 %v147
    %v187 = vunpack.c.l.b16 %v148
    %v188 = vunpack.c.l.b16 %v149
    %v189 = vunpack.c.l.b16 %v150
    %v190 = vunpack.c.l.b16 %v151
    %v191 = vunpack.c.l.b16 %v152
    %v192 = vunpack.c.l.b16 %v153
    %v193 = vunpack.c.l.b16 %v154
    %v194 = vpack.c.b16 %v179, %v178
    %v195 = vpack.c.b16 %v181, %v180
    %v196 = vpack.c.b16 %v183, %v182
    %v197 = vpack.c.b16 %v185, %v184
    %v198 = vpack.c.b16 %v187, %v186
    %v199 = vpack.c.b16 %v189, %v188
    %v200 = vpack.c.b16 %v191, %v190
    %v201 = vpack.c.b16 %v193, %v192
    %210 = vmatprep.subr.bf16.mxu0 0
    %211 = vmatpush1.bf16.msra.mxu0 %v194
    %212 = vmatprep.subr.bf16.mxu0 0
    %213 = vmatpush1.bf16.msra.mxu0 %v195
    %214 = vmatprep.subr.bf16.mxu0 0
    %215 = vmatpush1.bf16.msra.mxu0 %v196
    %216 = vmatprep.subr.bf16.mxu0 0
    %217 = vmatpush1.bf16.msra.mxu0 %v197
    %218 = vmatprep.subr.bf16.mxu0 0
    %219 = vmatpush1.bf16.msra.mxu0 %v198
    %220 = vmatprep.subr.bf16.mxu0 0
    %221 = vmatpush1.bf16.msra.mxu0 %v199
    %222 = vmatprep.subr.bf16.mxu0 0
    %223 = vmatpush1.bf16.msra.mxu0 %v200
    %224 = vmatprep.subr.bf16.mxu0 0
    %225 = vmatpush1.bf16.msra.mxu0 %v201
    %226 = vmatprep.subr.bf16.mxu0 0
    %227 = vmatpush1.bf16.msra.mxu0 0
    %228 = vmatprep.subr.bf16.mxu0 0
    %229 = vmatpush1.bf16.msra.mxu0 0
    %230 = vmatprep.subr.bf16.mxu0 0
    %231 = vmatpush1.bf16.msra.mxu0 0
    %232 = vmatprep.subr.bf16.mxu0 0
    %233 = vmatpush1.bf16.msra.mxu0 0
    %234 = vmatprep.subr.bf16.mxu0 0
    %235 = vmatpush1.bf16.msra.mxu0 0
    %236 = vmatprep.subr.bf16.mxu0 0
    %237 = vmatpush1.bf16.msra.mxu0 0
    %238 = vmatprep.subr.bf16.mxu0 0
    %239 = vmatpush1.bf16.msra.mxu0 0
    %240 = vmatprep.subr.bf16.mxu0 0
    %241 = vmatpush1.bf16.msra.mxu0 0
    %242 = vmatprep.mubr.bf16.mxu0 0
    %243 = vmatmul.mubr.bf16.gmra.mrb[0].mxu0 %v155
    %v244 = vpop.f32.mrb[0].mxu0
    %v245 = vadd.f32 %v161, %v244
    %v246 = vpop.f32.mrb[0].mxu0
    %v247 = vpop.f32.mrb[0].mxu0
    %v248 = vpop.f32.mrb[0].mxu0
    %249 = vdwg.mxu0
    %v250 = vmax.f32 %v245, 0.0
    %v251 = vld [vmem:[#allocation2 + $0x90] sm:$0xf]
    %v252 = vld [vmem:[#allocation2 + $0x94] sm:$0xf]
    %v253 = vld [vmem:[#allocation2 + $0x98] sm:$0xf]
    %v254 = vld [vmem:[#allocation2 + $0x9c] sm:$0xf]
    %v255 = vld [vmem:[#allocation2 + $0xa0] sm:$0xf]
    %v256 = vld [vmem:[#allocation2 + $0xa4] sm:$0xf]
    %v257 = vld [vmem:[#allocation2 + $0xa8] sm:$0xf]
    %v258 = vld [vmem:[#allocation2 + $0xac] sm:$0xf]
    %v259 = vld [vmem:[#allocation2 + $0xb0] sm:$0xf]
    %v260 = vld [vmem:[#allocation2 + $0xb4] sm:$0xf]
    %v261 = vld [vmem:[#allocation2 + $0xb8] sm:$0xf]
    %v262 = vld [vmem:[#allocation2 + $0xbc] sm:$0xf]
    %v263 = vld [vmem:[#allocation2 + $0xc0] sm:$0xf]
    %v264 = vld [vmem:[#allocation2 + $0xc4] sm:$0xf]
    %v265 = vld [vmem:[#allocation2 + $0xc8] sm:$0xf]
    %v266 = vld [vmem:[#allocation2 + $0xcc] sm:$0xf]
    %v267 = vld [vmem:[#allocation2 + $0xd0] sm:$0x1]
    %v268 = vunpack.c.l.bf16 %v267
    %v269 = vlaneseq
    %v270 = vshrl.u32 %v269, 7
    %v271 = vsub.s32 0, %v270
    %v272 = vrot.slane %v268, %v271
    %v289 = vunpack.c.l.b16 %v251
    %v290 = vunpack.c.l.b16 %v252
    %v291 = vunpack.c.l.b16 %v253
    %v292 = vunpack.c.l.b16 %v254
    %v293 = vunpack.c.l.b16 %v255
    %v294 = vunpack.c.l.b16 %v256
    %v295 = vunpack.c.l.b16 %v257
    %v296 = vunpack.c.l.b16 %v258
    %v297 = vunpack.c.l.b16 %v259
    %v298 = vunpack.c.l.b16 %v260
    %v299 = vunpack.c.l.b16 %v261
    %v300 = vunpack.c.l.b16 %v262
    %v301 = vunpack.c.l.b16 %v263
    %v302 = vunpack.c.l.b16 %v264
    %v303 = vunpack.c.l.b16 %v265
    %v304 = vunpack.c.l.b16 %v266
    %v305 = vpack.c.b16 %v290, %v289
    %v306 = vpack.c.b16 %v292, %v291
    %v307 = vpack.c.b16 %v294, %v293
    %v308 = vpack.c.b16 %v296, %v295
    %v309 = vpack.c.b16 %v298, %v297
    %v310 = vpack.c.b16 %v300, %v299
    %v311 = vpack.c.b16 %v302, %v301
    %v312 = vpack.c.b16 %v304, %v303
    %321 = vmatprep.subr.bf16.mxu0 0
    %322 = vmatpush1.bf16.msra.mxu0 %v305
    %323 = vmatprep.subr.bf16.mxu0 0
    %324 = vmatpush1.bf16.msra.mxu0 %v306
    %325 = vmatprep.subr.bf16.mxu0 0
    %326 = vmatpush1.bf16.msra.mxu0 %v307
    %327 = vmatprep.subr.bf16.mxu0 0
    %328 = vmatpush1.bf16.msra.mxu0 %v308
    %329 = vmatprep.subr.bf16.mxu0 0
    %330 = vmatpush1.bf16.msra.mxu0 %v309
    %331 = vmatprep.subr.bf16.mxu0 0
    %332 = vmatpush1.bf16.msra.mxu0 %v310
    %333 = vmatprep.subr.bf16.mxu0 0
    %334 = vmatpush1.bf16.msra.mxu0 %v311
    %335 = vmatprep.subr.bf16.mxu0 0
    %336 = vmatpush1.bf16.msra.mxu0 %v312
    %337 = vmatprep.subr.bf16.mxu0 0
    %338 = vmatpush1.bf16.msra.mxu0 0
    %339 = vmatprep.subr.bf16.mxu0 0
    %340 = vmatpush1.bf16.msra.mxu0 0
    %341 = vmatprep.subr.bf16.mxu0 0
    %342 = vmatpush1.bf16.msra.mxu0 0
    %343 = vmatprep.subr.bf16.mxu0 0
    %344 = vmatpush1.bf16.msra.mxu0 0
    %345 = vmatprep.subr.bf16.mxu0 0
    %346 = vmatpush1.bf16.msra.mxu0 0
    %347 = vmatprep.subr.bf16.mxu0 0
    %348 = vmatpush1.bf16.msra.mxu0 0
    %349 = vmatprep.subr.bf16.mxu0 0
    %350 = vmatpush1.bf16.msra.mxu0 0
    %351 = vmatprep.subr.bf16.mxu0 0
    %352 = vmatpush1.bf16.msra.mxu0 0
    %353 = vmatprep.mubr.bf16.mxu0 0
    %354 = vmatmul.mubr.bf16.gmra.mrb[0].mxu0 %v27
    %v355 = vpop.f32.mrb[0].mxu0
    %v356 = vadd.f32 %v272, %v355
    %v357 = vpop.f32.mrb[0].mxu0
    %v358 = vpop.f32.mrb[0].mxu0
    %v359 = vpop.f32.mrb[0].mxu0
    %360 = vdwg.mxu0
    %v361 = vmax.f32 %v356, 0.0
    %v362 = vld [vmem:[#allocation2 + $0xd8] sm:$0xf]
    %v363 = vld [vmem:[#allocation2 + $0xdc] sm:$0xf]
    %v364 = vld [vmem:[#allocation2 + $0xe0] sm:$0xf]
    %v365 = vld [vmem:[#allocation2 + $0xe4] sm:$0xf]
    %v366 = vld [vmem:[#allocation2 + $0xe8] sm:$0xf]
    %v367 = vld [vmem:[#allocation2 + $0xec] sm:$0xf]
    %v368 = vld [vmem:[#allocation2 + $0xf0] sm:$0xf]
    %v369 = vld [vmem:[#allocation2 + $0xf4] sm:$0xf]
    %v370 = vld [vmem:[#allocation2 + $0xf8] sm:$0xf]
    %v371 = vld [vmem:[#allocation2 + $0xfc] sm:$0xf]
    %v372 = vld [vmem:[#allocation2 + $0x100] sm:$0xf]
    %v373 = vld [vmem:[#allocation2 + $0x104] sm:$0xf]
    %v374 = vld [vmem:[#allocation2 + $0x108] sm:$0xf]
    %v375 = vld [vmem:[#allocation2 + $0x10c] sm:$0xf]
    %v376 = vld [vmem:[#allocation2 + $0x110] sm:$0xf]
    %v377 = vld [vmem:[#allocation2 + $0x114] sm:$0xf]
    %v378 = vpack.c.bf16 %v361, %v361
    %v379 = vld [vmem:[#allocation2 + $0x118] sm:$0x1]
    %v380 = vunpack.c.l.bf16 %v379
    %v381 = vlaneseq
    %v382 = vshrl.u32 %v381, 7
    %v383 = vsub.s32 0, %v382
    %v384 = vrot.slane %v380, %v383
    %v401 = vunpack.c.l.b16 %v362
    %v402 = vunpack.c.l.b16 %v363
    %v403 = vunpack.c.l.b16 %v364
    %v404 = vunpack.c.l.b16 %v365
    %v405 = vunpack.c.l.b16 %v366
    %v406 = vunpack.c.l.b16 %v367
    %v407 = vunpack.c.l.b16 %v368
    %v408 = vunpack.c.l.b16 %v369
    %v409 = vunpack.c.l.b16 %v370
    %v410 = vunpack.c.l.b16 %v371
    %v411 = vunpack.c.l.b16 %v372
    %v412 = vunpack.c.l.b16 %v373
    %v413 = vunpack.c.l.b16 %v374
    %v414 = vunpack.c.l.b16 %v375
    %v415 = vunpack.c.l.b16 %v376
    %v416 = vunpack.c.l.b16 %v377
    %v417 = vpack.c.b16 %v402, %v401
    %v418 = vpack.c.b16 %v404, %v403
    %v419 = vpack.c.b16 %v406, %v405
    %v420 = vpack.c.b16 %v408, %v407
    %v421 = vpack.c.b16 %v410, %v409
    %v422 = vpack.c.b16 %v412, %v411
    %v423 = vpack.c.b16 %v414, %v413
    %v424 = vpack.c.b16 %v416, %v415
    %433 = vmatprep.subr.bf16.mxu0 0
    %434 = vmatpush1.bf16.msra.mxu0 %v417
    %435 = vmatprep.subr.bf16.mxu0 0
    %436 = vmatpush1.bf16.msra.mxu0 %v418
    %437 = vmatprep.subr.bf16.mxu0 0
    %438 = vmatpush1.bf16.msra.mxu0 %v419
    %439 = vmatprep.subr.bf16.mxu0 0
    %440 = vmatpush1.bf16.msra.mxu0 %v420
    %441 = vmatprep.subr.bf16.mxu0 0
    %442 = vmatpush1.bf16.msra.mxu0 %v421
    %443 = vmatprep.subr.bf16.mxu0 0
    %444 = vmatpush1.bf16.msra.mxu0 %v422
    %445 = vmatprep.subr.bf16.mxu0 0
    %446 = vmatpush1.bf16.msra.mxu0 %v423
    %447 = vmatprep.subr.bf16.mxu0 0
    %448 = vmatpush1.bf16.msra.mxu0 %v424
    %449 = vmatprep.subr.bf16.mxu0 0
    %450 = vmatpush1.bf16.msra.mxu0 0
    %451 = vmatprep.subr.bf16.mxu0 0
    %452 = vmatpush1.bf16.msra.mxu0 0
    %453 = vmatprep.subr.bf16.mxu0 0
    %454 = vmatpush1.bf16.msra.mxu0 0
    %455 = vmatprep.subr.bf16.mxu0 0
    %456 = vmatpush1.bf16.msra.mxu0 0
    %457 = vmatprep.subr.bf16.mxu0 0
    %458 = vmatpush1.bf16.msra.mxu0 0
    %459 = vmatprep.subr.bf16.mxu0 0
    %460 = vmatpush1.bf16.msra.mxu0 0
    %461 = vmatprep.subr.bf16.mxu0 0
    %462 = vmatpush1.bf16.msra.mxu0 0
    %463 = vmatprep.subr.bf16.mxu0 0
    %464 = vmatpush1.bf16.msra.mxu0 0
    %465 = vmatprep.mubr.bf16.mxu0 0
    %466 = vmatmul.mubr.bf16.gmra.mrb[0].mxu0 %v378
    %v467 = vpop.f32.mrb[0].mxu0
    %v468 = vadd.f32 %v384, %v467
    %v469 = vpop.f32.mrb[0].mxu0
    %v470 = vpop.f32.mrb[0].mxu0
    %v471 = vpop.f32.mrb[0].mxu0
    %472 = vdwg.mxu0
    %v473 = vmax.f32 %v468, 0.0
    %v474 = vld [vmem:[#allocation2 + $0x120] sm:$0xf]
    %v475 = vld [vmem:[#allocation2 + $0x124] sm:$0xf]
    %v476 = vld [vmem:[#allocation2 + $0x128] sm:$0xf]
    %v477 = vld [vmem:[#allocation2 + $0x12c] sm:$0xf]
    %v478 = vld [vmem:[#allocation2 + $0x130] sm:$0xf]
    %v479 = vld [vmem:[#allocation2 + $0x134] sm:$0xf]
    %v480 = vld [vmem:[#allocation2 + $0x138] sm:$0xf]
    %v481 = vld [vmem:[#allocation2 + $0x13c] sm:$0xf]
    %v482 = vld [vmem:[#allocation2 + $0x140] sm:$0xf]
    %v483 = vld [vmem:[#allocation2 + $0x144] sm:$0xf]
    %v484 = vld [vmem:[#allocation2 + $0x148] sm:$0xf]
    %v485 = vld [vmem:[#allocation2 + $0x14c] sm:$0xf]
    %v486 = vld [vmem:[#allocation2 + $0x150] sm:$0xf]
    %v487 = vld [vmem:[#allocation2 + $0x154] sm:$0xf]
    %v488 = vld [vmem:[#allocation2 + $0x158] sm:$0xf]
    %v489 = vld [vmem:[#allocation2 + $0x15c] sm:$0xf]
    %v490 = vpack.c.bf16 %v473, %v473
    %v491 = vld [vmem:[#allocation2 + $0x160] sm:$0x1]
    %v492 = vunpack.c.l.bf16 %v491
    %v493 = vlaneseq
    %v494 = vshrl.u32 %v493, 7
    %v495 = vsub.s32 0, %v494
    %v496 = vrot.slane %v492, %v495
    %v513 = vunpack.c.l.b16 %v474
    %v514 = vunpack.c.l.b16 %v475
    %v515 = vunpack.c.l.b16 %v476
    %v516 = vunpack.c.l.b16 %v477
    %v517 = vunpack.c.l.b16 %v478
    %v518 = vunpack.c.l.b16 %v479
    %v519 = vunpack.c.l.b16 %v480
    %v520 = vunpack.c.l.b16 %v481
    %v521 = vunpack.c.l.b16 %v482
    %v522 = vunpack.c.l.b16 %v483
    %v523 = vunpack.c.l.b16 %v484
    %v524 = vunpack.c.l.b16 %v485
    %v525 = vunpack.c.l.b16 %v486
    %v526 = vunpack.c.l.b16 %v487
    %v527 = vunpack.c.l.b16 %v488
    %v528 = vunpack.c.l.b16 %v489
    %v529 = vpack.c.b16 %v514, %v513
    %v530 = vpack.c.b16 %v516, %v515
    %v531 = vpack.c.b16 %v518, %v517
    %v532 = vpack.c.b16 %v520, %v519
    %v533 = vpack.c.b16 %v522, %v521
    %v534 = vpack.c.b16 %v524, %v523
    %v535 = vpack.c.b16 %v526, %v525
    %v536 = vpack.c.b16 %v528, %v527
    %545 = vmatprep.subr.bf16.mxu0 0
    %546 = vmatpush1.bf16.msra.mxu0 %v529
    %547 = vmatprep.subr.bf16.mxu0 0
    %548 = vmatpush1.bf16.msra.mxu0 %v530
    %549 = vmatprep.subr.bf16.mxu0 0
    %550 = vmatpush1.bf16.msra.mxu0 %v531
    %551 = vmatprep.subr.bf16.mxu0 0
    %552 = vmatpush1.bf16.msra.mxu0 %v532
    %553 = vmatprep.subr.bf16.mxu0 0
    %554 = vmatpush1.bf16.msra.mxu0 %v533
    %555 = vmatprep.subr.bf16.mxu0 0
    %556 = vmatpush1.bf16.msra.mxu0 %v534
    %557 = vmatprep.subr.bf16.mxu0 0
    %558 = vmatpush1.bf16.msra.mxu0 %v535
    %559 = vmatprep.subr.bf16.mxu0 0
    %560 = vmatpush1.bf16.msra.mxu0 %v536
    %561 = vmatprep.subr.bf16.mxu0 0
    %562 = vmatpush1.bf16.msra.mxu0 0
    %563 = vmatprep.subr.bf16.mxu0 0
    %564 = vmatpush1.bf16.msra.mxu0 0
    %565 = vmatprep.subr.bf16.mxu0 0
    %566 = vmatpush1.bf16.msra.mxu0 0
    %567 = vmatprep.subr.bf16.mxu0 0
    %568 = vmatpush1.bf16.msra.mxu0 0
    %569 = vmatprep.subr.bf16.mxu0 0
    %570 = vmatpush1.bf16.msra.mxu0 0
    %571 = vmatprep.subr.bf16.mxu0 0
    %572 = vmatpush1.bf16.msra.mxu0 0
    %573 = vmatprep.subr.bf16.mxu0 0
    %574 = vmatpush1.bf16.msra.mxu0 0
    %575 = vmatprep.subr.bf16.mxu0 0
    %576 = vmatpush1.bf16.msra.mxu0 0
    %577 = vmatprep.mubr.bf16.mxu0 0
    %578 = vmatmul.mubr.bf16.gmra.mrb[0].mxu0 %v490
    %v579 = vpop.f32.mrb[0].mxu0
    %v580 = vadd.f32 %v496, %v579
    %v581 = vpop.f32.mrb[0].mxu0
    %v582 = vpop.f32.mrb[0].mxu0
    %v583 = vpop.f32.mrb[0].mxu0
    %584 = vdwg.mxu0
    %vm585 = vcmask 25600
    %v586 = vsel %vm585, %v580, -inf
    %587 = vmax.xlane.f32.xlu0 %v586
    %v588 = vpop.xlane.xlu0 %587
    %v589 = vsub.f32 %v580, %v588
    %v590 = vmul.f32 %v589, 1.442695
    %v591 = vpow.pop %v590
    %v592 = vsel %vm585, %v591, 0.0
    %593 = vadd.xlane.f32.xlu0 %v592
    %v594 = vpop.xlane.xlu0 %593
    %v595 = vrcp.pop %v594
    %v596 = vmul.f32 %v591, %v595
    %v597 = vld [vmem:[#allocation2 + $0x168] sm:$0xf]
    %v598 = vld [vmem:[#allocation2 + $0x16c] sm:$0xf]
    %v599 = vld [vmem:[#allocation2 + $0x170] sm:$0xf]
    %v600 = vld [vmem:[#allocation2 + $0x174] sm:$0xf]
    %v601 = vld [vmem:[#allocation2 + $0x178] sm:$0xf]
    %v602 = vld [vmem:[#allocation2 + $0x17c] sm:$0xf]
    %v603 = vld [vmem:[#allocation2 + $0x180] sm:$0xf]
    %v604 = vld [vmem:[#allocation2 + $0x184] sm:$0xf]
    %v605 = vld [vmem:[#allocation2 + $0x188] sm:$0xf]
    %v606 = vld [vmem:[#allocation2 + $0x18c] sm:$0xf]
    %v607 = vld [vmem:[#allocation2 + $0x190] sm:$0xf]
    %v608 = vld [vmem:[#allocation2 + $0x194] sm:$0xf]
    %v609 = vld [vmem:[#allocation2 + $0x198] sm:$0xf]
    %v610 = vld [vmem:[#allocation2 + $0x19c] sm:$0xf]
    %v611 = vld [vmem:[#allocation2 + $0x1a0] sm:$0xf]
    %v612 = vld [vmem:[#allocation2 + $0x1a4] sm:$0xf]
    %v613 = vpack.c.bf16 %v250, %v250
    %v614 = vld [vmem:[#allocation2 + $0x1a8] sm:$0x1]
    %v615 = vunpack.c.l.bf16 %v614
    %v616 = vlaneseq
    %v617 = vshrl.u32 %v616, 7
    %v618 = vsub.s32 0, %v617
    %v619 = vrot.slane %v615, %v618
    %v636 = vunpack.c.l.b16 %v597
    %v637 = vunpack.c.l.b16 %v598
    %v638 = vunpack.c.l.b16 %v599
    %v639 = vunpack.c.l.b16 %v600
    %v640 = vunpack.c.l.b16 %v601
    %v641 = vunpack.c.l.b16 %v602
    %v642 = vunpack.c.l.b16 %v603
    %v643 = vunpack.c.l.b16 %v604
    %v644 = vunpack.c.l.b16 %v605
    %v645 = vunpack.c.l.b16 %v606
    %v646 = vunpack.c.l.b16 %v607
    %v647 = vunpack.c.l.b16 %v608
    %v648 = vunpack.c.l.b16 %v609
    %v649 = vunpack.c.l.b16 %v610
    %v650 = vunpack.c.l.b16 %v611
    %v651 = vunpack.c.l.b16 %v612
    %v652 = vpack.c.b16 %v637, %v636
    %v653 = vpack.c.b16 %v639, %v638
    %v654 = vpack.c.b16 %v641, %v640
    %v655 = vpack.c.b16 %v643, %v642
    %v656 = vpack.c.b16 %v645, %v644
    %v657 = vpack.c.b16 %v647, %v646
    %v658 = vpack.c.b16 %v649, %v648
    %v659 = vpack.c.b16 %v651, %v650
    %668 = vmatprep.subr.bf16.mxu0 0
    %669 = vmatpush1.bf16.msra.mxu0 %v652
    %670 = vmatprep.subr.bf16.mxu0 0
    %671 = vmatpush1.bf16.msra.mxu0 %v653
    %672 = vmatprep.subr.bf16.mxu0 0
    %673 = vmatpush1.bf16.msra.mxu0 %v654
    %674 = vmatprep.subr.bf16.mxu0 0
    %675 = vmatpush1.bf16.msra.mxu0 %v655
    %676 = vmatprep.subr.bf16.mxu0 0
    %677 = vmatpush1.bf16.msra.mxu0 %v656
    %678 = vmatprep.subr.bf16.mxu0 0
    %679 = vmatpush1.bf16.msra.mxu0 %v657
    %680 = vmatprep.subr.bf16.mxu0 0
    %681 = vmatpush1.bf16.msra.mxu0 %v658
    %682 = vmatprep.subr.bf16.mxu0 0
    %683 = vmatpush1.bf16.msra.mxu0 %v659
    %684 = vmatprep.subr.bf16.mxu0 0
    %685 = vmatpush1.bf16.msra.mxu0 0
    %686 = vmatprep.subr.bf16.mxu0 0
    %687 = vmatpush1.bf16.msra.mxu0 0
    %688 = vmatprep.subr.bf16.mxu0 0
    %689 = vmatpush1.bf16.msra.mxu0 0
    %690 = vmatprep.subr.bf16.mxu0 0
    %691 = vmatpush1.bf16.msra.mxu0 0
    %692 = vmatprep.subr.bf16.mxu0 0
    %693 = vmatpush1.bf16.msra.mxu0 0
    %694 = vmatprep.subr.bf16.mxu0 0
    %695 = vmatpush1.bf16.msra.mxu0 0
    %696 = vmatprep.subr.bf16.mxu0 0
    %697 = vmatpush1.bf16.msra.mxu0 0
    %698 = vmatprep.subr.bf16.mxu0 0
    %699 = vmatpush1.bf16.msra.mxu0 0
    %700 = vmatprep.mubr.bf16.mxu0 0
    %701 = vmatmul.mubr.bf16.gmra.mrb[0].mxu0 %v613
    %v702 = vpop.f32.mrb[0].mxu0
    %v703 = vadd.f32 %v619, %v702
    %v704 = vpop.f32.mrb[0].mxu0
    %v705 = vpop.f32.mrb[0].mxu0
    %v706 = vpop.f32.mrb[0].mxu0
    %707 = vdwg.mxu0
    %v708 = vld [vmem:[#allocation2 + $0x1b0] sm:$0x1]
    %v709 = vunpack.c.l.bf16 %v708
    %v710 = vld [vmem:[#allocation2 + $0x2b8] sm:$0x1]
    %v711 = vunpack.c.l.bf16 %v710
    %713 = vset.pattern.permute.xlu0 0
    %714 = vperm.xlu0 %713, %v596
    %v715 = vpop.permute.xlu0 %714
    %v717 = vlaneseq
    %v718 = vshrl.u32 %v717, 7
    %v719 = vsub.s32 0, %v718
    %v720 = vrot.slane %v709, %v719
    %v721 = vmul.f32 %v715, %v720
    %v722 = vadd.f32 %v703, %v721
    %v723 = vmax.f32 %v722, 0.0
    %v724 = vld [vmem:[#allocation2 + $0x1b8] sm:$0xf]
    %v725 = vld [vmem:[#allocation2 + $0x1bc] sm:$0xf]
    %v726 = vld [vmem:[#allocation2 + $0x1c0] sm:$0xf]
    %v727 = vld [vmem:[#allocation2 + $0x1c4] sm:$0xf]
    %v728 = vld [vmem:[#allocation2 + $0x1c8] sm:$0xf]
    %v729 = vld [vmem:[#allocation2 + $0x1cc] sm:$0xf]
    %v730 = vld [vmem:[#allocation2 + $0x1d0] sm:$0xf]
    %v731 = vld [vmem:[#allocation2 + $0x1d4] sm:$0xf]
    %v732 = vld [vmem:[#allocation2 + $0x1d8] sm:$0xf]
    %v733 = vld [vmem:[#allocation2 + $0x1dc] sm:$0xf]
    %v734 = vld [vmem:[#allocation2 + $0x1e0] sm:$0xf]
    %v735 = vld [vmem:[#allocation2 + $0x1e4] sm:$0xf]
    %v736 = vld [vmem:[#allocation2 + $0x1e8] sm:$0xf]
    %v737 = vld [vmem:[#allocation2 + $0x1ec] sm:$0xf]
    %v738 = vld [vmem:[#allocation2 + $0x1f0] sm:$0xf]
    %v739 = vld [vmem:[#allocation2 + $0x1f4] sm:$0xf]
    %v740 = vpack.c.bf16 %v723, %v723
    %v757 = vunpack.c.l.b16 %v724
    %v758 = vunpack.c.l.b16 %v725
    %v759 = vunpack.c.l.b16 %v726
    %v760 = vunpack.c.l.b16 %v727
    %v761 = vunpack.c.l.b16 %v728
    %v762 = vunpack.c.l.b16 %v729
    %v763 = vunpack.c.l.b16 %v730
    %v764 = vunpack.c.l.b16 %v731
    %v765 = vunpack.c.l.b16 %v732
    %v766 = vunpack.c.l.b16 %v733
    %v767 = vunpack.c.l.b16 %v734
    %v768 = vunpack.c.l.b16 %v735
    %v769 = vunpack.c.l.b16 %v736
    %v770 = vunpack.c.l.b16 %v737
    %v771 = vunpack.c.l.b16 %v738
    %v772 = vunpack.c.l.b16 %v739
    %v773 = vpack.c.b16 %v758, %v757
    %v774 = vpack.c.b16 %v760, %v759
    %v775 = vpack.c.b16 %v762, %v761
    %v776 = vpack.c.b16 %v764, %v763
    %v777 = vpack.c.b16 %v766, %v765
    %v778 = vpack.c.b16 %v768, %v767
    %v779 = vpack.c.b16 %v770, %v769
    %v780 = vpack.c.b16 %v772, %v771
    %789 = vmatprep.subr.bf16.mxu0 0
    %790 = vmatpush1.bf16.msra.mxu0 %v773
    %791 = vmatprep.subr.bf16.mxu0 0
    %792 = vmatpush1.bf16.msra.mxu0 %v774
    %793 = vmatprep.subr.bf16.mxu0 0
    %794 = vmatpush1.bf16.msra.mxu0 %v775
    %795 = vmatprep.subr.bf16.mxu0 0
    %796 = vmatpush1.bf16.msra.mxu0 %v776
    %797 = vmatprep.subr.bf16.mxu0 0
    %798 = vmatpush1.bf16.msra.mxu0 %v777
    %799 = vmatprep.subr.bf16.mxu0 0
    %800 = vmatpush1.bf16.msra.mxu0 %v778
    %801 = vmatprep.subr.bf16.mxu0 0
    %802 = vmatpush1.bf16.msra.mxu0 %v779
    %803 = vmatprep.subr.bf16.mxu0 0
    %804 = vmatpush1.bf16.msra.mxu0 %v780
    %805 = vmatprep.subr.bf16.mxu0 0
    %806 = vmatpush1.bf16.msra.mxu0 0
    %807 = vmatprep.subr.bf16.mxu0 0
    %808 = vmatpush1.bf16.msra.mxu0 0
    %809 = vmatprep.subr.bf16.mxu0 0
    %810 = vmatpush1.bf16.msra.mxu0 0
    %811 = vmatprep.subr.bf16.mxu0 0
    %812 = vmatpush1.bf16.msra.mxu0 0
    %813 = vmatprep.subr.bf16.mxu0 0
    %814 = vmatpush1.bf16.msra.mxu0 0
    %815 = vmatprep.subr.bf16.mxu0 0
    %816 = vmatpush1.bf16.msra.mxu0 0
    %817 = vmatprep.subr.bf16.mxu0 0
    %818 = vmatpush1.bf16.msra.mxu0 0
    %819 = vmatprep.subr.bf16.mxu0 0
    %820 = vmatpush1.bf16.msra.mxu0 0
    %821 = vmatprep.mubr.bf16.mxu0 0
    %822 = vmatmul.mubr.bf16.gmra.mrb[0].mxu0 %v740
    %v823 = vpop.f32.mrb[0].mxu0
    %v824 = vadd.f32 0.0, %v823
    %v825 = vpop.f32.mrb[0].mxu0
    %v826 = vpop.f32.mrb[0].mxu0
    %v827 = vpop.f32.mrb[0].mxu0
    %828 = vdwg.mxu0
    %v829 = vlaneseq
    %v830 = vshrl.u32 %v829, 7
    %v831 = vsub.s32 0, %v830
    %v832 = vrot.slane %v711, %v831
    %v833 = vadd.f32 %v832, %v824
    %834 = vset.pattern.permute.xlu0 1
    %835 = vperm.xlu0 %834, %v596
    %v836 = vpop.permute.xlu0 %835
    %v838 = vmul.f32 %v836, %v720
    %v839 = vadd.f32 %v703, %v838
    %v840 = vmax.f32 %v839, 0.0
    %v841 = vld [vmem:[#allocation2 + $0x1f8] sm:$0xf]
    %v842 = vld [vmem:[#allocation2 + $0x1fc] sm:$0xf]
    %v843 = vld [vmem:[#allocation2 + $0x200] sm:$0xf]
    %v844 = vld [vmem:[#allocation2 + $0x204] sm:$0xf]
    %v845 = vld [vmem:[#allocation2 + $0x208] sm:$0xf]
    %v846 = vld [vmem:[#allocation2 + $0x20c] sm:$0xf]
    %v847 = vld [vmem:[#allocation2 + $0x210] sm:$0xf]
    %v848 = vld [vmem:[#allocation2 + $0x214] sm:$0xf]
    %v849 = vld [vmem:[#allocation2 + $0x218] sm:$0xf]
    %v850 = vld [vmem:[#allocation2 + $0x21c] sm:$0xf]
    %v851 = vld [vmem:[#allocation2 + $0x220] sm:$0xf]
    %v852 = vld [vmem:[#allocation2 + $0x224] sm:$0xf]
    %v853 = vld [vmem:[#allocation2 + $0x228] sm:$0xf]
    %v854 = vld [vmem:[#allocation2 + $0x22c] sm:$0xf]
    %v855 = vld [vmem:[#allocation2 + $0x230] sm:$0xf]
    %v856 = vld [vmem:[#allocation2 + $0x234] sm:$0xf]
    %v857 = vpack.c.bf16 %v840, %v840
    %v874 = vunpack.c.l.b16 %v841
    %v875 = vunpack.c.l.b16 %v842
    %v876 = vunpack.c.l.b16 %v843
    %v877 = vunpack.c.l.b16 %v844
    %v878 = vunpack.c.l.b16 %v845
    %v879 = vunpack.c.l.b16 %v846
    %v880 = vunpack.c.l.b16 %v847
    %v881 = vunpack.c.l.b16 %v848
    %v882 = vunpack.c.l.b16 %v849
    %v883 = vunpack.c.l.b16 %v850
    %v884 = vunpack.c.l.b16 %v851
    %v885 = vunpack.c.l.b16 %v852
    %v886 = vunpack.c.l.b16 %v853
    %v887 = vunpack.c.l.b16 %v854
    %v888 = vunpack.c.l.b16 %v855
    %v889 = vunpack.c.l.b16 %v856
    %v890 = vpack.c.b16 %v875, %v874
    %v891 = vpack.c.b16 %v877, %v876
    %v892 = vpack.c.b16 %v879, %v878
    %v893 = vpack.c.b16 %v881, %v880
    %v894 = vpack.c.b16 %v883, %v882
    %v895 = vpack.c.b16 %v885, %v884
    %v896 = vpack.c.b16 %v887, %v886
    %v897 = vpack.c.b16 %v889, %v888
    %906 = vmatprep.subr.bf16.mxu0 0
    %907 = vmatpush1.bf16.msra.mxu0 %v890
    %908 = vmatprep.subr.bf16.mxu0 0
    %909 = vmatpush1.bf16.msra.mxu0 %v891
    %910 = vmatprep.subr.bf16.mxu0 0
    %911 = vmatpush1.bf16.msra.mxu0 %v892
    %912 = vmatprep.subr.bf16.mxu0 0
    %913 = vmatpush1.bf16.msra.mxu0 %v893
    %914 = vmatprep.subr.bf16.mxu0 0
    %915 = vmatpush1.bf16.msra.mxu0 %v894
    %916 = vmatprep.subr.bf16.mxu0 0
    %917 = vmatpush1.bf16.msra.mxu0 %v895
    %918 = vmatprep.subr.bf16.mxu0 0
    %919 = vmatpush1.bf16.msra.mxu0 %v896
    %920 = vmatprep.subr.bf16.mxu0 0
    %921 = vmatpush1.bf16.msra.mxu0 %v897
    %922 = vmatprep.subr.bf16.mxu0 0
    %923 = vmatpush1.bf16.msra.mxu0 0
    %924 = vmatprep.subr.bf16.mxu0 0
    %925 = vmatpush1.bf16.msra.mxu0 0
    %926 = vmatprep.subr.bf16.mxu0 0
    %927 = vmatpush1.bf16.msra.mxu0 0
    %928 = vmatprep.subr.bf16.mxu0 0
    %929 = vmatpush1.bf16.msra.mxu0 0
    %930 = vmatprep.subr.bf16.mxu0 0
    %931 = vmatpush1.bf16.msra.mxu0 0
    %932 = vmatprep.subr.bf16.mxu0 0
    %933 = vmatpush1.bf16.msra.mxu0 0
    %934 = vmatprep.subr.bf16.mxu0 0
    %935 = vmatpush1.bf16.msra.mxu0 0
    %936 = vmatprep.subr.bf16.mxu0 0
    %937 = vmatpush1.bf16.msra.mxu0 0
    %938 = vmatprep.mubr.bf16.mxu0 0
    %939 = vmatmul.mubr.bf16.gmra.mrb[0].mxu0 %v857
    %v940 = vpop.f32.mrb[0].mxu0
    %v941 = vadd.f32 0.0, %v940
    %v942 = vpop.f32.mrb[0].mxu0
    %v943 = vpop.f32.mrb[0].mxu0
    %v944 = vpop.f32.mrb[0].mxu0
    %945 = vdwg.mxu0
    %v946 = vadd.f32 %v833, %v941
    %947 = vset.pattern.permute.xlu0 2
    %948 = vperm.xlu0 %947, %v596
    %v949 = vpop.permute.xlu0 %948
    %v951 = vmul.f32 %v949, %v720
    %v952 = vadd.f32 %v703, %v951
    %v953 = vmax.f32 %v952, 0.0
    %v954 = vld [vmem:[#allocation2 + $0x238] sm:$0xf]
    %v955 = vld [vmem:[#allocation2 + $0x23c] sm:$0xf]
    %v956 = vld [vmem:[#allocation2 + $0x240] sm:$0xf]
    %v957 = vld [vmem:[#allocation2 + $0x244] sm:$0xf]
    %v958 = vld [vmem:[#allocation2 + $0x248] sm:$0xf]
    %v959 = vld [vmem:[#allocation2 + $0x24c] sm:$0xf]
    %v960 = vld [vmem:[#allocation2 + $0x250] sm:$0xf]
    %v961 = vld [vmem:[#allocation2 + $0x254] sm:$0xf]
    %v962 = vld [vmem:[#allocation2 + $0x258] sm:$0xf]
    %v963 = vld [vmem:[#allocation2 + $0x25c] sm:$0xf]
    %v964 = vld [vmem:[#allocation2 + $0x260] sm:$0xf]
    %v965 = vld [vmem:[#allocation2 + $0x264] sm:$0xf]
    %v966 = vld [vmem:[#allocation2 + $0x268] sm:$0xf]
    %v967 = vld [vmem:[#allocation2 + $0x26c] sm:$0xf]
    %v968 = vld [vmem:[#allocation2 + $0x270] sm:$0xf]
    %v969 = vld [vmem:[#allocation2 + $0x274] sm:$0xf]
    %v970 = vpack.c.bf16 %v953, %v953
    %v987 = vunpack.c.l.b16 %v954
    %v988 = vunpack.c.l.b16 %v955
    %v989 = vunpack.c.l.b16 %v956
    %v990 = vunpack.c.l.b16 %v957
    %v991 = vunpack.c.l.b16 %v958
    %v992 = vunpack.c.l.b16 %v959
    %v993 = vunpack.c.l.b16 %v960
    %v994 = vunpack.c.l.b16 %v961
    %v995 = vunpack.c.l.b16 %v962
    %v996 = vunpack.c.l.b16 %v963
    %v997 = vunpack.c.l.b16 %v964
    %v998 = vunpack.c.l.b16 %v965
    %v999 = vunpack.c.l.b16 %v966
    %v1000 = vunpack.c.l.b16 %v967
    %v1001 = vunpack.c.l.b16 %v968
    %v1002 = vunpack.c.l.b16 %v969
    %v1003 = vpack.c.b16 %v988, %v987
    %v1004 = vpack.c.b16 %v990, %v989
    %v1005 = vpack.c.b16 %v992, %v991
    %v1006 = vpack.c.b16 %v994, %v993
    %v1007 = vpack.c.b16 %v996, %v995
    %v1008 = vpack.c.b16 %v998, %v997
    %v1009 = vpack.c.b16 %v1000, %v999
    %v1010 = vpack.c.b16 %v1002, %v1001
    %1019 = vmatprep.subr.bf16.mxu0 0
    %1020 = vmatpush1.bf16.msra.mxu0 %v1003
    %1021 = vmatprep.subr.bf16.mxu0 0
    %1022 = vmatpush1.bf16.msra.mxu0 %v1004
    %1023 = vmatprep.subr.bf16.mxu0 0
    %1024 = vmatpush1.bf16.msra.mxu0 %v1005
    %1025 = vmatprep.subr.bf16.mxu0 0
    %1026 = vmatpush1.bf16.msra.mxu0 %v1006
    %1027 = vmatprep.subr.bf16.mxu0 0
    %1028 = vmatpush1.bf16.msra.mxu0 %v1007
    %1029 = vmatprep.subr.bf16.mxu0 0
    %1030 = vmatpush1.bf16.msra.mxu0 %v1008
    %1031 = vmatprep.subr.bf16.mxu0 0
    %1032 = vmatpush1.bf16.msra.mxu0 %v1009
    %1033 = vmatprep.subr.bf16.mxu0 0
    %1034 = vmatpush1.bf16.msra.mxu0 %v1010
    %1035 = vmatprep.subr.bf16.mxu0 0
    %1036 = vmatpush1.bf16.msra.mxu0 0
    %1037 = vmatprep.subr.bf16.mxu0 0
    %1038 = vmatpush1.bf16.msra.mxu0 0
    %1039 = vmatprep.subr.bf16.mxu0 0
    %1040 = vmatpush1.bf16.msra.mxu0 0
    %1041 = vmatprep.subr.bf16.mxu0 0
    %1042 = vmatpush1.bf16.msra.mxu0 0
    %1043 = vmatprep.subr.bf16.mxu0 0
    %1044 = vmatpush1.bf16.msra.mxu0 0
    %1045 = vmatprep.subr.bf16.mxu0 0
    %1046 = vmatpush1.bf16.msra.mxu0 0
    %1047 = vmatprep.subr.bf16.mxu0 0
    %1048 = vmatpush1.bf16.msra.mxu0 0
    %1049 = vmatprep.subr.bf16.mxu0 0
    %1050 = vmatpush1.bf16.msra.mxu0 0
    %1051 = vmatprep.mubr.bf16.mxu0 0
    %1052 = vmatmul.mubr.bf16.gmra.mrb[0].mxu0 %v970
    %v1053 = vpop.f32.mrb[0].mxu0
    %v1054 = vadd.f32 0.0, %v1053
    %v1055 = vpop.f32.mrb[0].mxu0
    %v1056 = vpop.f32.mrb[0].mxu0
    %v1057 = vpop.f32.mrb[0].mxu0
    %1058 = vdwg.mxu0
    %v1059 = vadd.f32 %v946, %v1054
    %1060 = vset.pattern.permute.xlu0 3
    %1061 = vperm.xlu0 %1060, %v596
    %v1062 = vpop.permute.xlu0 %1061
    %v1064 = vmul.f32 %v1062, %v720
    %v1065 = vadd.f32 %v703, %v1064
    %v1066 = vmax.f32 %v1065, 0.0
    %v1067 = vld [vmem:[#allocation2 + $0x278] sm:$0xf]
    %v1068 = vld [vmem:[#allocation2 + $0x27c] sm:$0xf]
    %v1069 = vld [vmem:[#allocation2 + $0x280] sm:$0xf]
    %v1070 = vld [vmem:[#allocation2 + $0x284] sm:$0xf]
    %v1071 = vld [vmem:[#allocation2 + $0x288] sm:$0xf]
    %v1072 = vld [vmem:[#allocation2 + $0x28c] sm:$0xf]
    %v1073 = vld [vmem:[#allocation2 + $0x290] sm:$0xf]
    %v1074 = vld [vmem:[#allocation2 + $0x294] sm:$0xf]
    %v1075 = vld [vmem:[#allocation2 + $0x298] sm:$0xf]
    %v1076 = vld [vmem:[#allocation2 + $0x29c] sm:$0xf]
    %v1077 = vld [vmem:[#allocation2 + $0x2a0] sm:$0xf]
    %v1078 = vld [vmem:[#allocation2 + $0x2a4] sm:$0xf]
    %v1079 = vld [vmem:[#allocation2 + $0x2a8] sm:$0xf]
    %v1080 = vld [vmem:[#allocation2 + $0x2ac] sm:$0xf]
    %v1081 = vld [vmem:[#allocation2 + $0x2b0] sm:$0xf]
    %v1082 = vld [vmem:[#allocation2 + $0x2b4] sm:$0xf]
    %v1083 = vpack.c.bf16 %v1066, %v1066
    %v1100 = vunpack.c.l.b16 %v1067
    %v1101 = vunpack.c.l.b16 %v1068
    %v1102 = vunpack.c.l.b16 %v1069
    %v1103 = vunpack.c.l.b16 %v1070
    %v1104 = vunpack.c.l.b16 %v1071
    %v1105 = vunpack.c.l.b16 %v1072
    %v1106 = vunpack.c.l.b16 %v1073
    %v1107 = vunpack.c.l.b16 %v1074
    %v1108 = vunpack.c.l.b16 %v1075
    %v1109 = vunpack.c.l.b16 %v1076
    %v1110 = vunpack.c.l.b16 %v1077
    %v1111 = vunpack.c.l.b16 %v1078
    %v1112 = vunpack.c.l.b16 %v1079
    %v1113 = vunpack.c.l.b16 %v1080
    %v1114 = vunpack.c.l.b16 %v1081
    %v1115 = vunpack.c.l.b16 %v1082
    %v1116 = vpack.c.b16 %v1101, %v1100
    %v1117 = vpack.c.b16 %v1103, %v1102
    %v1118 = vpack.c.b16 %v1105, %v1104
    %v1119 = vpack.c.b16 %v1107, %v1106
    %v1120 = vpack.c.b16 %v1109, %v1108
    %v1121 = vpack.c.b16 %v1111, %v1110
    %v1122 = vpack.c.b16 %v1113, %v1112
    %v1123 = vpack.c.b16 %v1115, %v1114
    %1132 = vmatprep.subr.bf16.mxu0 0
    %1133 = vmatpush1.bf16.msra.mxu0 %v1116
    %1134 = vmatprep.subr.bf16.mxu0 0
    %1135 = vmatpush1.bf16.msra.mxu0 %v1117
    %1136 = vmatprep.subr.bf16.mxu0 0
    %1137 = vmatpush1.bf16.msra.mxu0 %v1118
    %1138 = vmatprep.subr.bf16.mxu0 0
    %1139 = vmatpush1.bf16.msra.mxu0 %v1119
    %1140 = vmatprep.subr.bf16.mxu0 0
    %1141 = vmatpush1.bf16.msra.mxu0 %v1120
    %1142 = vmatprep.subr.bf16.mxu0 0
    %1143 = vmatpush1.bf16.msra.mxu0 %v1121
    %1144 = vmatprep.subr.bf16.mxu0 0
    %1145 = vmatpush1.bf16.msra.mxu0 %v1122
    %1146 = vmatprep.subr.bf16.mxu0 0
    %1147 = vmatpush1.bf16.msra.mxu0 %v1123
    %1148 = vmatprep.subr.bf16.mxu0 0
    %1149 = vmatpush1.bf16.msra.mxu0 0
    %1150 = vmatprep.subr.bf16.mxu0 0
    %1151 = vmatpush1.bf16.msra.mxu0 0
    %1152 = vmatprep.subr.bf16.mxu0 0
    %1153 = vmatpush1.bf16.msra.mxu0 0
    %1154 = vmatprep.subr.bf16.mxu0 0
    %1155 = vmatpush1.bf16.msra.mxu0 0
    %1156 = vmatprep.subr.bf16.mxu0 0
    %1157 = vmatpush1.bf16.msra.mxu0 0
    %1158 = vmatprep.subr.bf16.mxu0 0
    %1159 = vmatpush1.bf16.msra.mxu0 0
    %1160 = vmatprep.subr.bf16.mxu0 0
    %1161 = vmatpush1.bf16.msra.mxu0 0
    %1162 = vmatprep.subr.bf16.mxu0 0
    %1163 = vmatpush1.bf16.msra.mxu0 0
    %1164 = vmatprep.mubr.bf16.mxu0 0
    %1165 = vmatmul.mubr.bf16.gmra.mrb[0].mxu0 %v1083
    %v1166 = vpop.f32.mrb[0].mxu0
    %v1167 = vadd.f32 0.0, %v1166
    %v1168 = vpop.f32.mrb[0].mxu0
    %v1169 = vpop.f32.mrb[0].mxu0
    %v1170 = vpop.f32.mrb[0].mxu0
    %1171 = vdwg.mxu0
    %v1172 = vadd.f32 %v1059, %v1167
    %1173 = vst [vmem:[#allocation5] sm:$0x3] %v1172
    // Predicated region
    $region14: #{qnet1_forward.1} parent=1 // pred_check
      _
    $region15: #{qnet1_forward.1} parent=1 // pred_check_branch
      %1175 = sbr.rel (0) target = $region17
    $region16: #{qnet1_forward.1} parent=1 // pred_region
      %s1177 = ssub.s32 32, 32
      %1178 = vsyncadd [#allocation4], %s1177
      %s1180 = sshll.u32 [#allocation5], 4
      %s1181 = int_to_ptr.vmem [resolvable:$true] %s1180
      %1183 = dma.vmem_to_hbm [thread:$0]  %s1181, 32, %s2, [#allocation4]
    $region17: #{qnet1_forward.1} parent=1 // pred_fallthru
      _
    // Predicated region
    $region18: #{qnet1_forward.1} parent=1 // pred_check
      _
    $region19: #{qnet1_forward.1} parent=1 // pred_check_branch
      %1185 = sbr.rel (0) target = $region21
    $region20: #{qnet1_forward.1} parent=1 // pred_region
      %1186 = dma.done [#allocation4], 32
    $region21: #{qnet1_forward.1} parent=1 // pred_fallthru
      _
    %1187 = vsyncpa [#allocation3], 1
    %1188 = vsyncpa [#allocation4], 1

</llo_original>
